<compile_context>
chip_gen: v6e
topology: v6e:2x2x1
jax: 0.10.0
libtpu: 0.0.40
codegen_flags: <defaults>
</compile_context>

<pallas_src>
import jax
import jax.numpy as jnp
import numpy as np
from jax import lax
from jax.experimental import pallas as pl
from jax.experimental.pallas import tpu as pltpu


def sine_layer_kernel(x_ref, w_ref, b_ref, o_ref):
    # x_ref: (TN, IN_pad)  w_ref: (OUT_pad, IN_pad)  b_ref: (1, OUT_pad)
    # o_ref: (TN, OUT_pad)
    # omega_0 is already folded into w_ref / b_ref by the wrapper.
    z = lax.dot_general(
        x_ref[...], w_ref[...],
        dimension_numbers=(((1,), (1,)), ((), ())),   # contract IN with IN
        preferred_element_type=jnp.float32,
    )
    z = z + b_ref[...]                                # broadcast (1, OUT) over rows
    o_ref[...] = jnp.sin(z).astype(o_ref.dtype)


def _round_up(x, m):
    return ((x + m - 1) // m) * m


def _pick_tile_and_vmem(n_rows, in_pad, out_pad, dtype_bytes=4):
    """VMEM-aware row-tile size and an explicit scoped-VMEM limit."""
    try:
        phys = int(pltpu.get_tpu_info().vmem_capacity_bytes)
    except Exception:  # pragma: no cover - info query unavailable
        phys = 64 << 20
    # Keep double-buffered working set well inside scoped VMEM on every gen
    # (v7x has only 64 MiB physical, so the budget halves there automatically).
    budget = min(phys // 4, 28 << 20)
    vmem_limit = min(phys // 2, 64 << 20)
    fixed = 2 * (in_pad * out_pad + out_pad) * dtype_bytes       # W + b (dbl-buffered)
    per_row = 2 * (in_pad + out_pad) * dtype_bytes               # x + out tiles (dbl-buffered)
    tile = (budget - fixed) // max(per_row, 1)
    tile = max(8, min(int(tile), 2048, _round_up(n_rows, 8)))
    tile = max(8, (tile // 8) * 8)                               # (8,128) sublane rule
    return tile, vmem_limit


def sine_layer(x, weight, bias=None, *, omega_0=30.0, tile_n=None):
    """x: (N, in_features); weight: (out_features, in_features) like nn.Linear;
    bias: (out_features,) or None.  Returns sin(omega_0 * (x @ weight.T + bias))."""
    N, in_features = x.shape
    out_features, in_features_w = weight.shape
    assert in_features_w == in_features
    dtype = x.dtype
    itemsize = jnp.dtype(dtype).itemsize

    # Lane/sublane-friendly padded feature dims (zeros -> sliced off below).
    in_pad = _round_up(max(in_features, 8), 8)
    out_pad = _round_up(max(out_features, 128), 128)
    # TODO(synk): for the very thin first/last SIREN layers (in=2-3 / out=1)
    # a VPU multiply-add or plain XLA is cheaper than this MXU-shaped kernel.

    # Fold omega_0 into the parameters once (O(IN*OUT), constant-foldable).
    omega = jnp.asarray(omega_0, weight.dtype)
    w = weight * omega
    b = bias if bias is not None else jnp.zeros((out_features,), weight.dtype)
    b = b * omega

    if out_pad != out_features or in_pad != in_features:
        w = jnp.pad(w, ((0, out_pad - out_features), (0, in_pad - in_features)))
        b = jnp.pad(b, (0, out_pad - out_features))
    x_p = x if in_pad == in_features else jnp.pad(x, ((0, 0), (0, in_pad - in_features)))

    if tile_n is None:
        tile_n, vmem_limit = _pick_tile_and_vmem(N, in_pad, out_pad, itemsize)
    else:
        tile_n = max(8, (int(tile_n) // 8) * 8)
        _, vmem_limit = _pick_tile_and_vmem(N, in_pad, out_pad, itemsize)

    n_pad = _round_up(N, tile_n)
    if n_pad != N:
        x_p = jnp.pad(x_p, ((0, n_pad - N), (0, 0)))

    b2 = b.reshape(1, out_pad)
    grid = (n_pad // tile_n,)

    cost = pl.CostEstimate(
        flops=2 * n_pad * in_pad * out_pad,
        transcendentals=n_pad * out_pad,
        bytes_accessed=(n_pad * in_pad + out_pad * in_pad + out_pad
                        + n_pad * out_pad) * itemsize,
    )

    out = pl.pallas_call(
        sine_layer_kernel,
        out_shape=jax.ShapeDtypeStruct((n_pad, out_pad), dtype),
        grid_spec=pltpu.PrefetchScalarGridSpec(
            num_scalar_prefetch=0,
            grid=grid,
            in_specs=[
                pl.BlockSpec((tile_n, in_pad), lambda i: (i, 0)),
                pl.BlockSpec((out_pad, in_pad), lambda i: (0, 0)),
                pl.BlockSpec((1, out_pad), lambda i: (0, 0)),
            ],
            out_specs=pl.BlockSpec((tile_n, out_pad), lambda i: (i, 0)),
        ),
        compiler_params=pltpu.CompilerParams(
            dimension_semantics=("parallel",),
            vmem_limit_bytes=int(vmem_limit),
        ),
        cost_estimate=cost,
    )(x_p, w, b2)

    return out[:N, :out_features]


def init_sine_layer_params(key, in_features, out_features, *, is_first=False,
                           omega_0=30.0, dtype=jnp.float32):
    """Deterministic SIREN init matching SineLayer.init_weights()."""
    kw, kb = jax.random.split(key)
    if is_first:
        bound_w = 1.0 / in_features
    else:
        bound_w = np.sqrt(6.0 / in_features) / omega_0
    weight = jax.random.uniform(kw, (out_features, in_features),
                                minval=-bound_w, maxval=bound_w, dtype=dtype)
    # nn.Linear default bias init: U(-1/sqrt(in), 1/sqrt(in))
    bound_b = 1.0 / np.sqrt(in_features)
    bias = jax.random.uniform(kb, (out_features,),
                              minval=-bound_b, maxval=bound_b, dtype=dtype)
    return weight, bias


if __name__ == "__main__":
    key = jax.random.PRNGKey(0)
    k1, k2, k3, k4 = jax.random.split(key, 4)
    omega_0 = 30.0

    # Case 1: nice shapes (first SIREN layer style).
    batch, in_features, out_features = 16, 8, 32
    x = jax.random.normal(k1, (batch, in_features), dtype=jnp.float32)
    weight, bias = init_sine_layer_params(
        k2, in_features, out_features, is_first=True, omega_0=omega_0)
    out = jax.block_until_ready(sine_layer(x, weight, bias, omega_0=omega_0))
    ref = jnp.sin(omega_0 * (x @ weight.T + bias))
    np.testing.assert_allclose(np.asarray(out), np.asarray(ref),
                               rtol=1e-5, atol=2e-5)

    # Case 2: awkward shapes (exercise row / feature padding paths).
    batch2, in2, out2 = 20, 12, 40
    x2 = jax.random.normal(k3, (batch2, in2), dtype=jnp.float32)
    w2, b2 = init_sine_layer_params(
        k4, in2, out2, is_first=False, omega_0=omega_0)
    out2_v = jax.block_until_ready(sine_layer(x2, w2, b2, omega_0=omega_0))
    ref2 = jnp.sin(omega_0 * (x2 @ w2.T + b2))
    np.testing.assert_allclose(np.asarray(out2_v), np.asarray(ref2),
                               rtol=1e-5, atol=2e-5)

    print("KERNEL_OK")
</pallas_src>

<mosaic_0001>
module attributes {stable_mosaic.version = 11 : i64} {
  func.func @sine_layer_kernel(%arg0: i32, %arg1: memref<16x8xf32, #tpu.memory_space<vmem>>, %arg2: memref<128x8xf32, #tpu.memory_space<vmem>>, %arg3: memref<1x128xf32, #tpu.memory_space<vmem>>, %arg4: memref<16x128xf32, #tpu.memory_space<vmem>>) attributes {dimension_semantics = [#tpu.dimension_semantics<parallel>], iteration_bounds = array<i64: 1>, scalar_prefetch = 0 : i64, scratch_operands = 0 : i64, tpu.core_type = #tpu.core_type<tc>, window_params = [{transform_indices = @transform_0, window_bounds = array<i64: 16, 8>}, {pipeline_mode = #tpu.pipeline_mode<synchronous>, transform_indices = @transform_1, window_bounds = array<i64: 128, 8>}, {pipeline_mode = #tpu.pipeline_mode<synchronous>, transform_indices = @transform_2, window_bounds = array<i64: 1, 128>}, {transform_indices = @transform_3, window_bounds = array<i64: 16, 128>}]} {
    %c0 = arith.constant 0 : index
    %c0_0 = arith.constant 0 : index
    %0 = vector.load %arg1[%c0, %c0_0] : memref<16x8xf32, #tpu.memory_space<vmem>>, vector<16x8xf32>
    %c0_1 = arith.constant 0 : index
    %c0_2 = arith.constant 0 : index
    %1 = vector.load %arg2[%c0_1, %c0_2] : memref<128x8xf32, #tpu.memory_space<vmem>>, vector<128x8xf32>
    %cst = arith.constant dense<0.000000e+00> : vector<16x128xf32>
    %2 = tpu.matmul %0, %1, %cst {dimension_numbers = #tpu.dot_dimension_numbers<[1], [1], [0], [0], [0, 0, 1, 0], [], []>} : vector<16x8xf32>, vector<128x8xf32>, vector<16x128xf32> -> vector<16x128xf32>
    %c0_3 = arith.constant 0 : index
    %c0_4 = arith.constant 0 : index
    %3 = vector.load %arg3[%c0_3, %c0_4] : memref<1x128xf32, #tpu.memory_space<vmem>>, vector<1x128xf32>
    %4 = vector.broadcast %3 : vector<1x128xf32> to vector<16x128xf32>
    %5 = arith.addf %2, %4 : vector<16x128xf32>
    %6 = math.sin %5 : vector<16x128xf32>
    %c0_5 = arith.constant 0 : index
    %c0_6 = arith.constant 0 : index
    %7 = vector.load %arg4[%c0_5, %c0_6] : memref<16x128xf32, #tpu.memory_space<vmem>>, vector<16x128xf32>
    tpu.vector_store %arg4[%c0_5, %c0_6], %6 {strides = array<i32>} : memref<16x128xf32, #tpu.memory_space<vmem>>, vector<16x128xf32>,
    return
  }
  func.func @transform_0(%arg0: i32) -> (i32, i32) {
    %c0_i32 = arith.constant 0 : i32
    %c0_i32_0 = arith.constant 0 : i32
    return %arg0, %c0_i32 : i32, i32
  }
  func.func @transform_1(%arg0: i32) -> (i32, i32) {
    %c0_i32 = arith.constant 0 : i32
    %c0_i32_0 = arith.constant 0 : i32
    %c0_i32_1 = arith.constant 0 : i32
    return %c0_i32, %c0_i32_0 : i32, i32
  }
  func.func @transform_2(%arg0: i32) -> (i32, i32) {
    %c0_i32 = arith.constant 0 : i32
    %c0_i32_0 = arith.constant 0 : i32
    %c0_i32_1 = arith.constant 0 : i32
    return %c0_i32, %c0_i32_0 : i32, i32
  }
  func.func @transform_3(%arg0: i32) -> (i32, i32) {
    %c0_i32 = arith.constant 0 : i32
    %c0_i32_0 = arith.constant 0 : i32
    return %arg0, %c0_i32 : i32, i32
  }
}

</mosaic_0001>

<llo_original>
// kernel: tpu_custom_call.1
$region0: #{tpu_custom_call.1}
  #allocation0 [shape = 'u32[]', space=smem, size = 0x4, offset = 0x4, fixed_abs, tag = 'smem constant byte address 0x4 - core index']
  #allocation1 [shape = 'u32[144,128]{1,0:T(1,128)}', space=vmem, size = 0x12000, scoped, tag = 'internal scratch']
  %s0 = inlined_call_operand.vmem [shape: f32[16,8], index: 0, kind: input, shape index: {}]
  %s1 = inlined_call_operand.vmem [shape: f32[128,8], index: 1, kind: input, shape index: {}]
  %s2 = inlined_call_operand.vmem [shape: f32[1,128], index: 2, kind: input, shape index: {}]
  %s3 = inlined_call_operand.hbm [shape: f32[16,128], index: 3, kind: output, shape index: {}]
  %s4 = sld [smem:[#allocation0]]
  $region22: #{tpu_custom_call.1} parent=0
    _
  %s6 = ssub.s32 1, %s4
  %s7 = scalar_select 0, %s6, %s4
  $region1: #{tpu_custom_call.1} parent=0
    #allocation2 [shape = 'u8[8192]{0}', space=vmem, size = 0x2000, scoped, tag = 'output window, operand 0, single buffered']
    #allocation3 [shape = 's32[1]{0}', space=sflag, size = 0x4, scoped, tag = 'scoped memory for tpu_custom_call.1']
    %8 = vsyncpa [#allocation3], 0
    // Predicated region
    $region2: #{tpu_custom_call.1} parent=1 // pred_check
      _
    $region3: #{tpu_custom_call.1} parent=1 // pred_check_branch
      %10 = sbr.rel (0) target = $region5
    $region4: #{tpu_custom_call.1} parent=1 // pred_region
      _
    $region5: #{tpu_custom_call.1} parent=1 // pred_fallthru
      _
    // Predicated region
    $region6: #{tpu_custom_call.1} parent=1 // pred_check
      _
    $region7: #{tpu_custom_call.1} parent=1 // pred_check_branch
      %12 = sbr.rel (0) target = $region9
    $region8: #{tpu_custom_call.1} parent=1 // pred_region
      _
    $region9: #{tpu_custom_call.1} parent=1 // pred_fallthru
      _
    // Predicated region
    $region10: #{tpu_custom_call.1} parent=1 // pred_check
      _
    $region11: #{tpu_custom_call.1} parent=1 // pred_check_branch
      %14 = sbr.rel (0) target = $region13
    $region12: #{tpu_custom_call.1} parent=1 // pred_region
      _
    $region13: #{tpu_custom_call.1} parent=1 // pred_fallthru
      _
    %v15 = vld [vmem:[%s0] sm:$0xff]
    %v16 = vld [vmem:[%s0 + $0x8] sm:$0xff]
    %v17 = vld [vmem:[%s1] sm:$0xff]
    %v18 = vld [vmem:[%s1 + $0x8] sm:$0xff]
    %v19 = vld [vmem:[%s1 + $0x10] sm:$0xff]
    %v20 = vld [vmem:[%s1 + $0x18] sm:$0xff]
    %v21 = vld [vmem:[%s1 + $0x20] sm:$0xff]
    %v22 = vld [vmem:[%s1 + $0x28] sm:$0xff]
    %v23 = vld [vmem:[%s1 + $0x30] sm:$0xff]
    %v24 = vld [vmem:[%s1 + $0x38] sm:$0xff]
    %v25 = vld [vmem:[%s1 + $0x40] sm:$0xff]
    %v26 = vld [vmem:[%s1 + $0x48] sm:$0xff]
    %v27 = vld [vmem:[%s1 + $0x50] sm:$0xff]
    %v28 = vld [vmem:[%s1 + $0x58] sm:$0xff]
    %v29 = vld [vmem:[%s1 + $0x60] sm:$0xff]
    %v30 = vld [vmem:[%s1 + $0x68] sm:$0xff]
    %v31 = vld [vmem:[%s1 + $0x70] sm:$0xff]
    %v32 = vld [vmem:[%s1 + $0x78] sm:$0xff]
    %v33 = vld [vmem:[%s2] sm:$0x1]
    %v35 = vlaneseq
    %v36 = vshrl.u32 %v35, 7
    %v37 = vsub.s32 0, %v36
    %v38 = vrot.slane %v33, %v37
    %vm40 = vcmask 64512
    %v42 = vsel %vm40, %v15, 0
    %v45 = vsel %vm40, %v16, 0
    %v48 = vsel %vm40, %v17, 0
    %v51 = vsel %vm40, %v18, 0
    %v54 = vsel %vm40, %v19, 0
    %v57 = vsel %vm40, %v20, 0
    %v60 = vsel %vm40, %v21, 0
    %v63 = vsel %vm40, %v22, 0
    %v66 = vsel %vm40, %v23, 0
    %v69 = vsel %vm40, %v24, 0
    %v72 = vsel %vm40, %v25, 0
    %v75 = vsel %vm40, %v26, 0
    %v78 = vsel %vm40, %v27, 0
    %v81 = vsel %vm40, %v28, 0
    %v84 = vsel %vm40, %v29, 0
    %v87 = vsel %vm40, %v30, 0
    %v90 = vsel %vm40, %v31, 0
    %v93 = vsel %vm40, %v32, 0
    %95 = vmatprep.subr.mxu0 0.0
    %96 = vmatpush1.xpose.msra.mxu0 %v93
    %97 = vmatprep.subr.mxu0 0.0
    %98 = vmatpush1.xpose.msra.mxu0 %v90
    %99 = vmatprep.subr.mxu0 0.0
    %100 = vmatpush1.xpose.msra.mxu0 %v87
    %101 = vmatprep.subr.mxu0 0.0
    %102 = vmatpush1.xpose.msra.mxu0 %v84
    %103 = vmatprep.subr.mxu0 0.0
    %104 = vmatpush1.xpose.msra.mxu0 %v81
    %105 = vmatprep.subr.mxu0 0.0
    %106 = vmatpush1.xpose.msra.mxu0 %v78
    %107 = vmatprep.subr.mxu0 0.0
    %108 = vmatpush1.xpose.msra.mxu0 %v75
    %109 = vmatprep.subr.mxu0 0.0
    %110 = vmatpush1.xpose.msra.mxu0 %v72
    %111 = vmatprep.subr.mxu0 0.0
    %112 = vmatpush1.xpose.msra.mxu0 %v69
    %113 = vmatprep.subr.mxu0 0.0
    %114 = vmatpush1.xpose.msra.mxu0 %v66
    %115 = vmatprep.subr.mxu0 0.0
    %116 = vmatpush1.xpose.msra.mxu0 %v63
    %117 = vmatprep.subr.mxu0 0.0
    %118 = vmatpush1.xpose.msra.mxu0 %v60
    %119 = vmatprep.subr.mxu0 0.0
    %120 = vmatpush1.xpose.msra.mxu0 %v57
    %121 = vmatprep.subr.mxu0 0.0
    %122 = vmatpush1.xpose.msra.mxu0 %v54
    %123 = vmatprep.subr.mxu0 0.0
    %124 = vmatpush1.xpose.msra.mxu0 %v51
    %125 = vmatprep.subr.mxu0 0.0
    %126 = vmatpush1.xpose.msra.mxu0 %v48
    %127 = vmatprep.subr.mxu0 0.0
    %128 = vmatpush2.xpose.msra.mxu0 0.0
    %129 = vmatprep.subr.mxu0 0.0
    %130 = vmatpush2.xpose.msra.mxu0 0.0
    %131 = vmatprep.subr.mxu0 0.0
    %132 = vmatpush2.xpose.msra.mxu0 0.0
    %133 = vmatprep.subr.mxu0 0.0
    %134 = vmatpush2.xpose.msra.mxu0 0.0
    %135 = vmatprep.subr.mxu0 0.0
    %136 = vmatpush2.xpose.msra.mxu0 0.0
    %137 = vmatprep.subr.mxu0 0.0
    %138 = vmatpush2.xpose.msra.mxu0 0.0
    %139 = vmatprep.subr.mxu0 0.0
    %140 = vmatpush2.xpose.msra.mxu0 0.0
    %141 = vmatprep.subr.mxu0 0.0
    %142 = vmatpush2.xpose.msra.mxu0 0.0
    %143 = vmatprep.subr.mxu0 0.0
    %144 = vmatpush2.xpose.msra.mxu0 0.0
    %145 = vmatprep.subr.mxu0 0.0
    %146 = vmatpush2.xpose.msra.mxu0 0.0
    %147 = vmatprep.subr.mxu0 0.0
    %148 = vmatpush2.xpose.msra.mxu0 0.0
    %149 = vmatprep.subr.mxu0 0.0
    %150 = vmatpush2.xpose.msra.mxu0 0.0
    %151 = vmatprep.subr.mxu0 0.0
    %152 = vmatpush2.xpose.msra.mxu0 0.0
    %153 = vmatprep.subr.mxu0 0.0
    %154 = vmatpush2.xpose.msra.mxu0 0.0
    %155 = vmatprep.subr.mxu0 0.0
    %156 = vmatpush2.xpose.msra.mxu0 0.0
    %157 = vmatprep.subr.mxu0 0.0
    %158 = vmatpush2.xpose.msra.mxu0 0.0
    %159 = vmatprep.mubr.f32.mxu0 0.0
    %160 = vmatmul.mubr.f32.gmra.mxu0 %v42
    %v161 = vpop.f32.mrf.mxu0
    %v162 = vadd.f32 %v38, %v161
    %v163 = vpop.f32.mrf.mxu0
    %164 = vmatprep.mubr.f32.mxu0 0.0
    %165 = vmatmul.mubr.f32.gmra.mxu0 %v45
    %v166 = vpop.f32.mrf.mxu0
    %v167 = vadd.f32 %v38, %v166
    %v168 = vpop.f32.mrf.mxu0
    %169 = vdwg.mxu0
    %v170 = vand.u32 2147483647, %v162
    %vm171 = vcmp.le.f32.partialorder %v170, 0.7853982
    %vm172 = vcmp.lt.s32.totalorder %v162, 0
    %v173 = vand.u32 %v162, 2139095040
    %v174 = vshrl.u32 %v173, 23
    %v175 = vsub.s32 %v174, 127
    %v176 = vand.u32 2147483647, %v162
    %v177 = vand.u32 %v176, 8388607
    %v178 = vor.u32 %v177, 8388608
    %v179 = vsub.s32 0, %v178
    %v180 = vadd.s32 %v175, 1
    %vm181 = vcmp.gt.s32.totalorder %v180, 0
    %v182 = vsel %vm181, %v180, 0
    %v183 = vshrl.u32 %v182, 5
    %v184 = vand.u32 %v182, 31
    %v185 = vsub.s32 32, %v184
    %v186 = vshrl.u32 683565275, %v185
    %v187 = vshll.u32 683565275, %v184
    %v188 = vshrl.u32 2475754826, %v185
    %v189 = vor.u32 %v187, %v188
    %v190 = vshll.u32 2475754826, %v184
    %v191 = vshrl.u32 2131351028, %v185
    %v192 = vor.u32 %v190, %v191
    %v193 = vshll.u32 2131351028, %v184
    %v194 = vshrl.u32 2102212464, %v185
    %v195 = vor.u32 %v193, %v194
    %v196 = vshll.u32 2102212464, %v184
    %v197 = vshrl.u32 920167782, %v185
    %v198 = vor.u32 %v196, %v197
    %v199 = vshll.u32 920167782, %v184
    %v200 = vshrl.u32 1326507024, %v185
    %v201 = vor.u32 %v199, %v200
    %vm202 = vcmp.lt.s32.totalorder %v183, 1
    %vm203 = vcmp.lt.s32.totalorder %v183, 2
    %vm204 = vcmp.lt.s32.totalorder %v183, 3
    %vm205 = vcmp.lt.s32.totalorder %v183, 4
    %v206 = vsel %vm202, %v186, %v189
    %v207 = vsel %vm205, %v195, 2102212464
    %v208 = vsel %vm204, %v192, %v207
    %v209 = vsel %vm203, %v206, %v208
    %v210 = vsel %vm202, %v189, %v192
    %v211 = vsel %vm205, %v198, 920167782
    %v212 = vsel %vm204, %v195, %v211
    %v213 = vsel %vm203, %v210, %v212
    %v214 = vsel %vm202, %v192, %v195
    %v215 = vsel %vm205, %v201, 1326507024
    %v216 = vsel %vm204, %v198, %v215
    %v217 = vsel %vm203, %v214, %v216
    %v218 = vshll.u32 %v178, 8
    %v219 = vmul.u32.u64.compose %v218, %v217
    %v220 = vextract.low.u32 %v219
    %v221 = vextract.high.u32 %v219
    %v222 = vmul.u32.u64.compose %v218, %v213
    %v223 = vextract.low.u32 %v222
    %v224 = vextract.high.u32 %v222
    %v225 = vmul.u32 %v218, %v209
    %v226 = vadd.s32 %v221, %v223
    %vm227 = vc.u32 %v221, %v223
    %v228 = vadd.s32 %v224, 1
    %v229 = vsel %vm227, %v228, %v224
    %v230 = vadd.s32 %v225, %v229
    %v231 = vadd.s32 %v230, 536870912
    %v232 = vshrl.u32 %v231, 30
    %v233 = vshll.u32 %v232, 30
    %v234 = vsub.s32 %v230, %v233
    %vm235 = vcmp.lt.s32.totalorder %v234, 0
    %v236 = vsub.s32 0, %v234
    %v237 = vsel %vm235, %v236, %v234
    %v238 = vclz %v237
    %v239 = vsub.s32 %v238, 2
    %vm240 = vcmp.gt.s32.totalorder 0, %v239
    %v241 = vsel %vm240, 0, %v239
    %v242 = vsub.s32 32, %v241
    %v243 = vshll.u32 %v234, %v241
    %v244 = vshrl.u32 %v226, %v242
    %v245 = vor.u32 %v243, %v244
    %v246 = vsub.s32 4294967266, %v241
    %v247 = vadd.s32 %v246, 127
    %v248 = vshll.u32 %v247, 23
    %v249 = vor.u32 4788187, %v248
    %v250 = vand.u32 2147483647, %v249
    %v252 = vcvt.s32.f32 %v245
    %v253 = vmul.f32 %v252, %v250
    %v254 = vxor.u32 %v253, 2147483648
    %v255 = vsel %vm172, %v254, %v253
    %v256 = vsub.s32 4, %v232
    %v257 = vsel %vm172, %v256, %v232
    %v258 = vsel %vm171, %v162, %v255
    %v259 = vsel %vm171, 0, %v257
    %v260 = vcosq.f32.pop %v258
    %v261 = vsinq.f32.pop %v258
    %vm262 = vweird.f32 %v162
    %v263 = vadd.s32 %v259, 3
    %v264 = vand.u32 %v263, 3
    %vm265 = vcmp.lt.s32.totalorder %v264, 2
    %vm266 = vcmp.eq.s32.totalorder %v264, 0
    %v267 = vxor.u32 %v261, 2147483648
    %v268 = vsel %vm266, %v260, %v267
    %vm269 = vcmp.eq.s32.totalorder %v264, 2
    %v270 = vxor.u32 %v260, 2147483648
    %v271 = vsel %vm269, %v270, %v261
    %v272 = vsel %vm265, %v268, %v271
    %v273 = vsel %vm262, nan, %v272
    %v274 = vand.u32 2147483647, %v167
    %vm275 = vcmp.le.f32.partialorder %v274, 0.7853982
    %vm276 = vcmp.lt.s32.totalorder %v167, 0
    %v277 = vand.u32 %v167, 2139095040
    %v278 = vshrl.u32 %v277, 23
    %v279 = vsub.s32 %v278, 127
    %v280 = vand.u32 2147483647, %v167
    %v281 = vand.u32 %v280, 8388607
    %v282 = vor.u32 %v281, 8388608
    %v283 = vsub.s32 0, %v282
    %v284 = vadd.s32 %v279, 1
    %vm285 = vcmp.gt.s32.totalorder %v284, 0
    %v286 = vsel %vm285, %v284, 0
    %v287 = vshrl.u32 %v286, 5
    %v288 = vand.u32 %v286, 31
    %v289 = vsub.s32 32, %v288
    %v290 = vshrl.u32 683565275, %v289
    %v291 = vshll.u32 683565275, %v288
    %v292 = vshrl.u32 2475754826, %v289
    %v293 = vor.u32 %v291, %v292
    %v294 = vshll.u32 2475754826, %v288
    %v295 = vshrl.u32 2131351028, %v289
    %v296 = vor.u32 %v294, %v295
    %v297 = vshll.u32 2131351028, %v288
    %v298 = vshrl.u32 2102212464, %v289
    %v299 = vor.u32 %v297, %v298
    %v300 = vshll.u32 2102212464, %v288
    %v301 = vshrl.u32 920167782, %v289
    %v302 = vor.u32 %v300, %v301
    %v303 = vshll.u32 920167782, %v288
    %v304 = vshrl.u32 1326507024, %v289
    %v305 = vor.u32 %v303, %v304
    %vm306 = vcmp.lt.s32.totalorder %v287, 1
    %vm307 = vcmp.lt.s32.totalorder %v287, 2
    %vm308 = vcmp.lt.s32.totalorder %v287, 3
    %vm309 = vcmp.lt.s32.totalorder %v287, 4
    %v310 = vsel %vm306, %v290, %v293
    %v311 = vsel %vm309, %v299, 2102212464
    %v312 = vsel %vm308, %v296, %v311
    %v313 = vsel %vm307, %v310, %v312
    %v314 = vsel %vm306, %v293, %v296
    %v315 = vsel %vm309, %v302, 920167782
    %v316 = vsel %vm308, %v299, %v315
    %v317 = vsel %vm307, %v314, %v316
    %v318 = vsel %vm306, %v296, %v299
    %v319 = vsel %vm309, %v305, 1326507024
    %v320 = vsel %vm308, %v302, %v319
    %v321 = vsel %vm307, %v318, %v320
    %v322 = vshll.u32 %v282, 8
    %v323 = vmul.u32.u64.compose %v322, %v321
    %v324 = vextract.low.u32 %v323
    %v325 = vextract.high.u32 %v323
    %v326 = vmul.u32.u64.compose %v322, %v317
    %v327 = vextract.low.u32 %v326
    %v328 = vextract.high.u32 %v326
    %v329 = vmul.u32 %v322, %v313
    %v330 = vadd.s32 %v325, %v327
    %vm331 = vc.u32 %v325, %v327
    %v332 = vadd.s32 %v328, 1
    %v333 = vsel %vm331, %v332, %v328
    %v334 = vadd.s32 %v329, %v333
    %v335 = vadd.s32 %v334, 536870912
    %v336 = vshrl.u32 %v335, 30
    %v337 = vshll.u32 %v336, 30
    %v338 = vsub.s32 %v334, %v337
    %vm339 = vcmp.lt.s32.totalorder %v338, 0
    %v340 = vsub.s32 0, %v338
    %v341 = vsel %vm339, %v340, %v338
    %v342 = vclz %v341
    %v343 = vsub.s32 %v342, 2
    %vm344 = vcmp.gt.s32.totalorder 0, %v343
    %v345 = vsel %vm344, 0, %v343
    %v346 = vsub.s32 32, %v345
    %v347 = vshll.u32 %v338, %v345
    %v348 = vshrl.u32 %v330, %v346
    %v349 = vor.u32 %v347, %v348
    %v350 = vsub.s32 4294967266, %v345
    %v351 = vadd.s32 %v350, 127
    %v352 = vshll.u32 %v351, 23
    %v353 = vor.u32 4788187, %v352
    %v354 = vand.u32 2147483647, %v353
    %v356 = vcvt.s32.f32 %v349
    %v357 = vmul.f32 %v356, %v354
    %v358 = vxor.u32 %v357, 2147483648
    %v359 = vsel %vm276, %v358, %v357
    %v360 = vsub.s32 4, %v336
    %v361 = vsel %vm276, %v360, %v336
    %v362 = vsel %vm275, %v167, %v359
    %v363 = vsel %vm275, 0, %v361
    %v364 = vcosq.f32.pop %v362
    %v365 = vsinq.f32.pop %v362
    %vm366 = vweird.f32 %v167
    %v367 = vadd.s32 %v363, 3
    %v368 = vand.u32 %v367, 3
    %vm369 = vcmp.lt.s32.totalorder %v368, 2
    %vm370 = vcmp.eq.s32.totalorder %v368, 0
    %v371 = vxor.u32 %v365, 2147483648
    %v372 = vsel %vm370, %v364, %v371
    %vm373 = vcmp.eq.s32.totalorder %v368, 2
    %v374 = vxor.u32 %v364, 2147483648
    %v375 = vsel %vm373, %v374, %v365
    %v376 = vsel %vm369, %v372, %v375
    %v377 = vsel %vm366, nan, %v376
    %378 = vst [vmem:[#allocation2] sm:$0xff] %v273
    %379 = vst [vmem:[#allocation2 + $0x8] sm:$0xff] %v377
    // Predicated region
    $region14: #{tpu_custom_call.1} parent=1 // pred_check
      _
    $region15: #{tpu_custom_call.1} parent=1 // pred_check_branch
      %381 = sbr.rel (0) target = $region17
    $region16: #{tpu_custom_call.1} parent=1 // pred_region
      %s383 = ssub.s32 256, 256
      %384 = vsyncadd [#allocation3], %s383
      %s385 = sshll.u32 [#allocation2], 4
      %s386 = int_to_ptr.vmem [resolvable:$true] %s385
      %391 = dma.vmem_to_hbm [thread:$0]  %s386, 256, %s3, [#allocation3], 128, 128, 8
    $region17: #{tpu_custom_call.1} parent=1 // pred_fallthru
      _
    // Predicated region
    $region18: #{tpu_custom_call.1} parent=1 // pred_check
      _
    $region19: #{tpu_custom_call.1} parent=1 // pred_check_branch
      %393 = sbr.rel (0) target = $region21
    $region20: #{tpu_custom_call.1} parent=1 // pred_region
      %394 = dma.done [#allocation3], 256
    $region21: #{tpu_custom_call.1} parent=1 // pred_fallthru
      _
    %395 = vsyncpa [#allocation3], 1

</llo_original>
